<compile_context>
chip_gen: v7x
topology: tpu7x:2x2x1
jax: 0.10.0
libtpu: 0.0.40
codegen_flags: <defaults>
</compile_context>

<pallas_src>
import functools

import numpy as np
import jax
import jax.numpy as jnp
from jax.experimental import pallas as pl
from jax.experimental.pallas import tpu as pltpu

SCORE_THRESHOLD = 0.9


def _round_up(x, m):
    return ((x + m - 1) // m) * m


def _ppn_post_kernel(pred_ref, out_ref, *, score_threshold, num_type_logits):
    """Per-point PPN post-processing (channels-first layout).

    pred_ref : (C, TILE_N) f32   rows: 3 offsets, 2 score logits, K type logits
    out_ref  : (8, TILE_N) f32   rows: [off_x+0.5, off_y+0.5, off_z+0.5,
                                         score1, value, keep_flag, 0, 0]
    All reads/writes are lane-dense (TILE_N is a multiple of 128).
    """
    tile_n = pred_ref.shape[1]

    # Point offsets shifted by +0.5 (voxel center).
    offs = pred_ref[0:3, :] + 0.5                                 # (3, TILE_N)

    # 2-class softmax prob of class 1 == sigmoid(logit1 - logit0).
    # Mathematically identical to softmax(pred[:, 3:5])[:, 1]; pure VPU/EUP
    # elementwise work, no cross-lane max/sum.
    l0 = pred_ref[3:4, :]
    l1 = pred_ref[4:5, :]
    score1 = 1.0 / (1.0 + jnp.exp(l0 - l1))                       # (1, TILE_N)

    # Score-thresholding keep mask.
    keep = (score1 > score_threshold).astype(jnp.float32)         # (1, TILE_N)

    if num_type_logits > 0:
        # value = argmax over type logits (first occurrence on ties),
        # computed with a short unrolled elementwise compare loop.
        running_max = pred_ref[5:6, :]                            # (1, TILE_N)
        value = jnp.zeros((1, tile_n), jnp.float32)
        for k in range(1, num_type_logits):
            tk = pred_ref[5 + k:6 + k, :]
            gt = tk > running_max
            running_max = jnp.where(gt, tk, running_max)
            value = jnp.where(gt, jnp.full_like(value, float(k)), value)
    else:
        value = score1

    # Lane-dense, unmasked full-row stores (no masked partial vst).
    out_ref[0:3, :] = offs
    out_ref[3:4, :] = score1
    out_ref[4:5, :] = value
    out_ref[5:6, :] = keep
    out_ref[6:8, :] = jnp.zeros((2, tile_n), jnp.float32)


def run_ppn_kernel(predictions, score_threshold=SCORE_THRESHOLD, tile_n=2048):
    """Runs the per-point kernel; returns an (N, 8) f32 array.

    Columns: [off_x+0.5, off_y+0.5, off_z+0.5, score1, value, keep, 0, 0].
    """
    predictions = jnp.asarray(predictions, dtype=jnp.float32)
    N, C = predictions.shape
    num_type_logits = C - 5 if C > 5 else 0

    # Tile N along the lane axis; pad to a multiple of the tile.  Padded
    # columns are zero (score 0.5 -> keep=0) and are sliced away afterwards.
    tile_n = min(tile_n, _round_up(N, 128))
    n_pad = _round_up(N, tile_n)

    # Layout plumbing in the wrapper: channels-first (C, N) so N maps to lanes.
    pred_t = jnp.transpose(predictions)                           # (C, N)
    if n_pad != N:
        pred_t = jnp.pad(pred_t, ((0, 0), (0, n_pad - N)))

    kernel = functools.partial(
        _ppn_post_kernel,
        score_threshold=score_threshold,
        num_type_logits=num_type_logits,
    )

    out_t = pl.pallas_call(
        kernel,
        out_shape=jax.ShapeDtypeStruct((8, n_pad), jnp.float32),
        grid=(n_pad // tile_n,),
        in_specs=[pl.BlockSpec((C, tile_n), lambda i: (0, i))],
        out_specs=pl.BlockSpec((8, tile_n), lambda i: (0, i)),
        compiler_params=pltpu.CompilerParams(
            dimension_semantics=("parallel",)),
    )(pred_t)                                                     # (8, n_pad)

    return jnp.transpose(out_t[:, :N])                            # (N, 8)


def ppn_postprocessing(ppn_input, algo='score_thresholding',
                       score_threshold=SCORE_THRESHOLD):
    """Mirrors PPNPostProcessing.forward for algo='score_thresholding'."""
    predictions, ppn1, ppn2, attention1, attention2, point_cloud = ppn_input

    # Hot path on TPU.
    per_point = np.asarray(jax.device_get(
        run_ppn_kernel(predictions, score_threshold)))

    pc = np.asarray(point_cloud, dtype=np.float32)
    # TODO(synk): reference takes the first 3 ROWS (`point_cloud[:3]`) and
    # indexes voxels[i] by position in the kept list; reproduced verbatim here
    # (would IndexError in the reference too if a batch keeps > 3 points).
    voxels = pc[:3]
    batch_index = np.unique(pc[:, -2])

    output_points = []
    for batch_id in batch_index:
        batch_mask = pc[:, -2] == batch_id
        bp = per_point[batch_mask]
        if algo == 'score_thresholding':
            keep = bp[:, 5] > 0.5            # keep flag computed in the kernel
        kept = bp[keep]
        for i in range(kept.shape[0]):
            voxel = voxels[i]
            value = kept[i, 4]
            output_points.append([
                float(voxel[0] + kept[i, 0]),  # voxel[0] + 0.5 + point[0]
                float(voxel[1] + kept[i, 1]),
                float(voxel[2] + kept[i, 2]),
                float(batch_id),
                float(value),
            ])
    return np.asarray(output_points, dtype=np.float32)


def _numpy_reference(ppn_input, score_threshold=SCORE_THRESHOLD):
    """Pure-numpy port of the original torch forward (for verification)."""
    predictions, _, _, _, _, point_cloud = ppn_input
    pred = np.asarray(predictions, dtype=np.float32)
    pc = np.asarray(point_cloud, dtype=np.float32)

    logits = pred[:, 3:5]
    e = np.exp(logits - logits.max(axis=1, keepdims=True))
    scores = e / e.sum(axis=1, keepdims=True)

    voxels = pc[:3]
    batch_index = np.unique(pc[:, -2])
    out = []
    for batch_id in batch_index:
        mask = pc[:, -2] == batch_id
        bpred = pred[mask]
        bscores = scores[mask]
        keep = bscores[:, 1] > score_threshold
        kept = bpred[keep]
        for i in range(kept.shape[0]):
            point = kept[i]
            voxel = voxels[i]
            if point.shape[0] > 5:
                value = float(np.argmax(point[5:]))
            else:
                value = float(bscores[keep][i, 1])
            out.append([voxel[0] + 0.5 + point[0],
                        voxel[1] + 0.5 + point[1],
                        voxel[2] + 0.5 + point[2],
                        float(batch_id), value])
    return np.asarray(out, dtype=np.float32)


if __name__ == "__main__":
    key = jax.random.PRNGKey(0)
    k1, k2, k3, k4, k5, k6 = jax.random.split(key, 6)

    N = 32    # number of candidate points
    C = 9     # 3 offsets + 2 score logits + 4 type logits
    B = 2     # batches

    predictions = jax.random.normal(k1, (N, C), dtype=jnp.float32)
    # Deterministic score logits: keep 2 points per batch above threshold 0.9.
    score_col3 = np.full((N,), 2.0, np.float32)
    score_col4 = np.full((N,), -2.0, np.float32)
    for idx in (0, 1, 16, 17):
        score_col3[idx] = -5.0
        score_col4[idx] = 5.0
    predictions = predictions.at[:, 3].set(jnp.asarray(score_col3))
    predictions = predictions.at[:, 4].set(jnp.asarray(score_col4))

    # point_cloud: (N, 5) = [x, y, z, batch_id, feature]; column -2 is batch id.
    coords = jax.random.uniform(k2, (N, 3), dtype=jnp.float32) * 16.0
    batch_ids = jnp.concatenate([jnp.zeros((N // B,), jnp.float32),
                                 jnp.ones((N - N // B,), jnp.float32)])
    feats = jax.random.normal(k3, (N, 1), dtype=jnp.float32)
    point_cloud = jnp.concatenate([coords, batch_ids[:, None], feats], axis=1)

    # Unused auxiliary PPN outputs (kept to mirror the module's input tuple).
    ppn1 = jax.random.normal(k4, (4, 8), dtype=jnp.float32)
    ppn2 = jax.random.normal(k5, (4, 8), dtype=jnp.float32)
    attention1 = jax.random.uniform(k6, (N, 1), dtype=jnp.float32)
    attention2 = jnp.ones((N, 1), jnp.float32)

    ppn_input = (predictions, ppn1, ppn2, attention1, attention2, point_cloud)

    # Run the Pallas kernel path.
    per_point = run_ppn_kernel(predictions)
    jax.block_until_ready(per_point)

    out = ppn_postprocessing(ppn_input)
    ref = _numpy_reference(ppn_input)

    assert out.shape == ref.shape, (out.shape, ref.shape)
    assert np.allclose(out, ref, rtol=1e-4, atol=1e-4), (out, ref)

    print("KERNEL_OK")
</pallas_src>

<mosaic_0001>
module attributes {stable_mosaic.version = 11 : i64} {
  func.func @_ppn_post_kernel(%arg0: i32, %arg1: memref<9x128xf32, #tpu.memory_space<vmem>>, %arg2: memref<8x128xf32, #tpu.memory_space<vmem>>) attributes {dimension_semantics = [#tpu.dimension_semantics<parallel>], iteration_bounds = array<i64: 1>, scalar_prefetch = 0 : i64, scratch_operands = 0 : i64, tpu.core_type = #tpu.core_type<tc>, window_params = [{transform_indices = @transform_0, window_bounds = array<i64: 9, 128>}, {transform_indices = @transform_1, window_bounds = array<i64: 8, 128>}]} {
    %c0 = arith.constant 0 : index
    %c0_0 = arith.constant 0 : index
    %0 = vector.load %arg1[%c0, %c0_0] : memref<9x128xf32, #tpu.memory_space<vmem>>, vector<3x128xf32>
    %cst = arith.constant 5.000000e-01 : f32
    %1 = vector.broadcast %cst : f32 to vector<3x128xf32>
    %2 = arith.addf %0, %1 : vector<3x128xf32>
    %c3 = arith.constant 3 : index
    %c0_1 = arith.constant 0 : index
    %3 = vector.load %arg1[%c3, %c0_1] : memref<9x128xf32, #tpu.memory_space<vmem>>, vector<1x128xf32>
    %c4 = arith.constant 4 : index
    %c0_2 = arith.constant 0 : index
    %4 = vector.load %arg1[%c4, %c0_2] : memref<9x128xf32, #tpu.memory_space<vmem>>, vector<1x128xf32>
    %5 = arith.subf %3, %4 : vector<1x128xf32>
    %6 = math.exp %5 : vector<1x128xf32>
    %cst_3 = arith.constant 1.000000e+00 : f32
    %7 = vector.broadcast %cst_3 : f32 to vector<1x128xf32>
    %8 = arith.addf %7, %6 : vector<1x128xf32>
    %cst_4 = arith.constant 1.000000e+00 : f32
    %9 = vector.broadcast %cst_4 : f32 to vector<1x128xf32>
    %10 = arith.divf %9, %8 : vector<1x128xf32>
    %cst_5 = arith.constant 0.899999976 : f32
    %11 = vector.broadcast %cst_5 : f32 to vector<1x128xf32>
    %12 = arith.cmpf ogt, %10, %11 : vector<1x128xf32>
    %13 = arith.extui %12 : vector<1x128xi1> to vector<1x128xi32>
    %14 = arith.sitofp %13 : vector<1x128xi32> to vector<1x128xf32>
    %c5 = arith.constant 5 : index
    %c0_6 = arith.constant 0 : index
    %15 = vector.load %arg1[%c5, %c0_6] : memref<9x128xf32, #tpu.memory_space<vmem>>, vector<1x128xf32>
    %cst_7 = arith.constant 0.000000e+00 : f32
    %16 = vector.broadcast %cst_7 : f32 to vector<1x128xf32>
    %c6 = arith.constant 6 : index
    %c0_8 = arith.constant 0 : index
    %17 = vector.load %arg1[%c6, %c0_8] : memref<9x128xf32, #tpu.memory_space<vmem>>, vector<1x128xf32>
    %18 = arith.cmpf ogt, %17, %15 : vector<1x128xf32>
    %19 = arith.select %18, %17, %15 : vector<1x128xi1>, vector<1x128xf32>
    %cst_9 = arith.constant 1.000000e+00 : f32
    %20 = vector.broadcast %cst_9 : f32 to vector<1x128xf32>
    %21 = arith.select %18, %20, %16 : vector<1x128xi1>, vector<1x128xf32>
    %c7 = arith.constant 7 : index
    %c0_10 = arith.constant 0 : index
    %22 = vector.load %arg1[%c7, %c0_10] : memref<9x128xf32, #tpu.memory_space<vmem>>, vector<1x128xf32>
    %23 = arith.cmpf ogt, %22, %19 : vector<1x128xf32>
    %24 = arith.select %23, %22, %19 : vector<1x128xi1>, vector<1x128xf32>
    %cst_11 = arith.constant 2.000000e+00 : f32
    %25 = vector.broadcast %cst_11 : f32 to vector<1x128xf32>
    %26 = arith.select %23, %25, %21 : vector<1x128xi1>, vector<1x128xf32>
    %c8 = arith.constant 8 : index
    %c0_12 = arith.constant 0 : index
    %27 = vector.load %arg1[%c8, %c0_12] : memref<9x128xf32, #tpu.memory_space<vmem>>, vector<1x128xf32>
    %28 = arith.cmpf ogt, %27, %24 : vector<1x128xf32>
    %cst_13 = arith.constant 3.000000e+00 : f32
    %29 = vector.broadcast %cst_13 : f32 to vector<1x128xf32>
    %30 = arith.select %28, %29, %26 : vector<1x128xi1>, vector<1x128xf32>
    %c0_14 = arith.constant 0 : index
    %c0_15 = arith.constant 0 : index
    %31 = vector.load %arg2[%c0_14, %c0_15] : memref<8x128xf32, #tpu.memory_space<vmem>>, vector<3x128xf32>
    tpu.vector_store %arg2[%c0_14, %c0_15], %2 {strides = array<i32>} : memref<8x128xf32, #tpu.memory_space<vmem>>, vector<3x128xf32>,
    %c3_16 = arith.constant 3 : index
    %c0_17 = arith.constant 0 : index
    %32 = vector.load %arg2[%c3_16, %c0_17] : memref<8x128xf32, #tpu.memory_space<vmem>>, vector<1x128xf32>
    tpu.vector_store %arg2[%c3_16, %c0_17], %10 {strides = array<i32>} : memref<8x128xf32, #tpu.memory_space<vmem>>, vector<1x128xf32>,
    %c4_18 = arith.constant 4 : index
    %c0_19 = arith.constant 0 : index
    %33 = vector.load %arg2[%c4_18, %c0_19] : memref<8x128xf32, #tpu.memory_space<vmem>>, vector<1x128xf32>
    tpu.vector_store %arg2[%c4_18, %c0_19], %30 {strides = array<i32>} : memref<8x128xf32, #tpu.memory_space<vmem>>, vector<1x128xf32>,
    %c5_20 = arith.constant 5 : index
    %c0_21 = arith.constant 0 : index
    %34 = vector.load %arg2[%c5_20, %c0_21] : memref<8x128xf32, #tpu.memory_space<vmem>>, vector<1x128xf32>
    tpu.vector_store %arg2[%c5_20, %c0_21], %14 {strides = array<i32>} : memref<8x128xf32, #tpu.memory_space<vmem>>, vector<1x128xf32>,
    %cst_22 = arith.constant 0.000000e+00 : f32
    %35 = vector.broadcast %cst_22 : f32 to vector<2x128xf32>
    %c6_23 = arith.constant 6 : index
    %c0_24 = arith.constant 0 : index
    %36 = vector.load %arg2[%c6_23, %c0_24] : memref<8x128xf32, #tpu.memory_space<vmem>>, vector<2x128xf32>
    tpu.vector_store %arg2[%c6_23, %c0_24], %35 {strides = array<i32>} : memref<8x128xf32, #tpu.memory_space<vmem>>, vector<2x128xf32>,
    return
  }
  func.func @transform_0(%arg0: i32) -> (i32, i32) {
    %c0_i32 = arith.constant 0 : i32
    %c0_i32_0 = arith.constant 0 : i32
    return %c0_i32, %arg0 : i32, i32
  }
  func.func @transform_1(%arg0: i32) -> (i32, i32) {
    %c0_i32 = arith.constant 0 : i32
    %c0_i32_0 = arith.constant 0 : i32
    return %c0_i32, %arg0 : i32, i32
  }
}

</mosaic_0001>

<llo_original>
// kernel: tpu_custom_call.1
$region0: #{tpu_custom_call.1}
  #allocation0 [shape = 'u32[]', space=smem, size = 0x4, offset = 0x4, fixed_abs, tag = 'smem constant byte address 0x4 - core index']
  #allocation1 [shape = 'u32[144,128]{1,0:T(1,128)}', space=vmem, size = 0x12000, scoped, tag = 'internal scratch']
  %s0 = inlined_call_operand.hbm [shape: f32[9,128], index: 0, kind: input, shape index: {}]
  %s1 = inlined_call_operand.hbm [shape: f32[8,128], index: 1, kind: output, shape index: {}]
  %s2 = sld [smem:[#allocation0]]
  $region18: #{tpu_custom_call.1} parent=0
    _
  %s4 = ssub.s32 1, %s2
  %s5 = scalar_select 0, %s4, %s2
  $region1: #{tpu_custom_call.1} parent=0
    #allocation2 [shape = 'u8[8192]{0}', space=vmem, size = 0x2000, scoped, tag = 'input window, operand 0, single buffered']
    #allocation3 [shape = 's32[1]{0}', space=sflag, size = 0x4, scoped, tag = 'scoped memory for tpu_custom_call.1']
    #allocation4 [shape = 's32[1]{0}', space=sflag, size = 0x4, scoped, tag = 'scoped memory for tpu_custom_call.1']
    #allocation5 [shape = 'u8[4096]{0}', space=vmem, size = 0x1000, scoped, tag = 'output window, operand 0, single buffered']
    %6 = vsyncpa [#allocation3], 0
    %7 = vsyncpa [#allocation4], 0
    // Predicated region
    $region2: #{tpu_custom_call.1} parent=1 // pred_check
      _
    $region3: #{tpu_custom_call.1} parent=1 // pred_check_branch
      %9 = sbr.rel (0) target = $region5
    $region4: #{tpu_custom_call.1} parent=1 // pred_region
      %s11 = ssub.s32 256, 256
      %12 = vsyncadd [#allocation3], %s11
      %s13 = sshll.u32 [#allocation2], 4
      %s14 = int_to_ptr.vmem [resolvable:$true] %s13
      %19 = dma.hbm_to_vmem [thread:$0]  %s0, 256, %s14, [#allocation3], 128, 128, 8
    $region5: #{tpu_custom_call.1} parent=1 // pred_fallthru
      _
    // Predicated region
    $region6: #{tpu_custom_call.1} parent=1 // pred_check
      _
    $region7: #{tpu_custom_call.1} parent=1 // pred_check_branch
      %21 = sbr.rel (0) target = $region9
    $region8: #{tpu_custom_call.1} parent=1 // pred_region
      %22 = dma.done [#allocation3], 256
    $region9: #{tpu_custom_call.1} parent=1 // pred_fallthru
      _
    %v23 = vld [vmem:[#allocation2] sm:$0x7]
    %v24 = vadd.f32 %v23, 0.5
    %v25 = vld [vmem:[#allocation2 + $0x3] sm:$0x1]
    %v26 = vld [vmem:[#allocation2 + $0x4] sm:$0x1]
    %v27 = vsub.f32 %v25, %v26
    %v28 = vmul.f32 %v27, 1.442695
    %v29 = vpow.pop %v28
    %v30 = vadd.f32 %v29, 1.0
    %v31 = vrcp.pop %v30
    %v32 = vmul.f32 1.0, %v31
    %vm33 = vcmp.gt.f32.partialorder %v32, 0.9
    %v34 = vsel %vm33, 1, 0
    %v35 = vcvt.s32.f32 %v34
    %v36 = vld [vmem:[#allocation2 + $0x5] sm:$0x1]
    %v37 = vld [vmem:[#allocation2 + $0x6] sm:$0x1]
    %vm38 = vcmp.gt.f32.partialorder %v37, %v36
    %v39 = vsel %vm38, %v37, %v36
    %v40 = vsel %vm38, 1.0, 0.0
    %v41 = vld [vmem:[#allocation2 + $0x7] sm:$0x1]
    %vm42 = vcmp.gt.f32.partialorder %v41, %v39
    %v43 = vsel %vm42, %v41, %v39
    %v44 = vsel %vm42, 2.0, %v40
    %v45 = vld [vmem:[#allocation2 + $0x8] sm:$0x1]
    %vm46 = vcmp.gt.f32.partialorder %v45, %v43
    %v47 = vsel %vm46, 3.0, %v44
    %48 = vst [vmem:[#allocation5] sm:$0x7] %v24
    %49 = vst [vmem:[#allocation5 + $0x3] sm:$0x1] %v32
    %50 = vst [vmem:[#allocation5 + $0x4] sm:$0x1] %v47
    %51 = vst [vmem:[#allocation5 + $0x5] sm:$0x1] %v35
    %52 = vst [vmem:[#allocation5 + $0x6] sm:$0x3] 0.0
    // Predicated region
    $region10: #{tpu_custom_call.1} parent=1 // pred_check
      _
    $region11: #{tpu_custom_call.1} parent=1 // pred_check_branch
      %54 = sbr.rel (0) target = $region13
    $region12: #{tpu_custom_call.1} parent=1 // pred_region
      %s56 = ssub.s32 128, 128
      %57 = vsyncadd [#allocation4], %s56
      %s59 = sshll.u32 [#allocation5], 4
      %s60 = int_to_ptr.vmem [resolvable:$true] %s59
      %62 = dma.vmem_to_hbm [thread:$0]  %s60, 128, %s1, [#allocation4]
    $region13: #{tpu_custom_call.1} parent=1 // pred_fallthru
      _
    // Predicated region
    $region14: #{tpu_custom_call.1} parent=1 // pred_check
      _
    $region15: #{tpu_custom_call.1} parent=1 // pred_check_branch
      %64 = sbr.rel (0) target = $region17
    $region16: #{tpu_custom_call.1} parent=1 // pred_region
      %65 = dma.done [#allocation4], 128
    $region17: #{tpu_custom_call.1} parent=1 // pred_fallthru
      _
    %66 = vsyncpa [#allocation3], 1
    %67 = vsyncpa [#allocation4], 1

</llo_original>
